<compile_context>
chip_gen: v5e
topology: v5e:2x2
jax: 0.10.0
libtpu: 0.0.40
codegen_flags: <defaults>
</compile_context>

<pallas_src>
import jax
import jax.numpy as jnp
from jax.experimental import pallas as pl
from jax.experimental.pallas import tpu as pltpu


def frksm_kernel(x_ref, w_ref, g_ref, o_ref):
    # x_ref: (C, Lt)  bf16   one (batch, L-tile) block (batch dim squeezed)
    # w_ref: (M, C)   bf16   local 1x1-conv weight
    # g_ref: (M, 1)   f32    per-batch  global_fc(mean(x)) + b_global + b_local
    # o_ref: (M, Lt)  bf16
    y = jnp.dot(w_ref[...], x_ref[...],
                preferred_element_type=jnp.float32)           # (M, Lt) f32 acc
    z = (y + g_ref[...]).astype(jnp.bfloat16)                 # bf16 epilogue
    o_ref[...] = jax.nn.sigmoid(z).astype(o_ref.dtype)


def _pick_l_tile(L):
    """Largest lane-dense tile (multiple of 128) that divides L, else full L."""
    for t in (2048, 1024, 512, 256, 128):
        if L % t == 0:
            return t
    return L


def frksm_forward(x, w_local, b_local, w_global, b_global):
    """x: (B, C, H, W) float32. Returns (B, M, H, W) bfloat16."""
    B, C, H, W = x.shape
    M = w_local.shape[0]
    assert w_global.shape[0] == M, (
        "FrKSM broadcast add requires mid_channels == out_channels")
    L = H * W
    Lt = _pick_l_tile(L)
    nL = L // Lt

    # bf16 I/O for the bandwidth-bound tensor traffic; matmul accumulates f32.
    x_flat = x.reshape(B, C, L).astype(jnp.bfloat16)
    w_bf = w_local.astype(jnp.bfloat16)

    # Hoisted global branch (tiny XLA op, f32): mean-pool + Linear, with both
    # biases folded in.  Shape (B, M, 1); broadcast-added inside the kernel.
    pool = x.reshape(B, C, L).mean(axis=-1)                         # (B, C)
    glob = pool @ w_global.T + b_global[None, :] + b_local[None, :]  # (B, M)
    glob = glob.astype(jnp.float32).reshape(B, M, 1)

    out_flat = pl.pallas_call(
        frksm_kernel,
        out_shape=jax.ShapeDtypeStruct((B, M, L), jnp.bfloat16),
        grid_spec=pltpu.PrefetchScalarGridSpec(
            num_scalar_prefetch=0,
            grid=(B, nL),
            in_specs=[
                pl.BlockSpec((pl.Squeezed(), C, Lt), lambda b, l: (b, 0, l)),
                pl.BlockSpec((M, C), lambda b, l: (0, 0)),
                pl.BlockSpec((pl.Squeezed(), M, 1), lambda b, l: (b, 0, 0)),
            ],
            out_specs=pl.BlockSpec((pl.Squeezed(), M, Lt),
                                   lambda b, l: (b, 0, l)),
        ),
        compiler_params=pltpu.CompilerParams(
            dimension_semantics=("parallel", "parallel"),
        ),
    )(x_flat, w_bf, glob)

    return out_flat.reshape(B, M, H, W)


def frksm_reference(x, w_local, b_local, w_global, b_global):
    """Pure-JAX f32 reference matching the PyTorch forward."""
    B, C, H, W = x.shape
    x_flat = x.reshape(B, C, H * W)
    local = jnp.einsum("mc,bcl->bml", w_local, x_flat) + b_local[None, :, None]
    pool = x.mean(axis=(2, 3))                             # (B, C)
    glob = pool @ w_global.T + b_global[None, :]           # (B, M)
    out = jax.nn.sigmoid(local + glob[:, :, None])
    return out.reshape(B, -1, H, W)


if __name__ == "__main__":
    # Small shapes consistent with the module's forward.
    B, C, H, W = 2, 4, 16, 16
    MID = OUT = 8   # mid_channels must equal out_channels for the broadcast add

    key = jax.random.PRNGKey(0)
    kx, kwl, kbl, kwg, kbg = jax.random.split(key, 5)

    x = jax.random.normal(kx, (B, C, H, W), dtype=jnp.float32)
    # Conv1d(C, MID, k=1): weight (MID, C, 1) -> squeezed (MID, C); bias (MID,)
    # Linear(C, OUT):      weight (OUT, C); bias (OUT,)
    w_local = 0.1 * jax.random.normal(kwl, (MID, C), dtype=jnp.float32)
    b_local = 0.1 * jax.random.normal(kbl, (MID,), dtype=jnp.float32)
    w_global = 0.1 * jax.random.normal(kwg, (OUT, C), dtype=jnp.float32)
    b_global = 0.1 * jax.random.normal(kbg, (OUT,), dtype=jnp.float32)

    out = jax.block_until_ready(
        frksm_forward(x, w_local, b_local, w_global, b_global))

    # Compare against the full-precision f32 reference.  Tolerance (not exact
    # equivalence) is intentional: the kernel uses bf16 activations/weights on
    # the local branch and a bf16 output, which is a design choice.
    ref = frksm_reference(x, w_local, b_local, w_global, b_global)

    assert out.shape == (B, OUT, H, W)
    assert jnp.allclose(out.astype(jnp.float32), ref, atol=1e-2, rtol=1e-2)

    print("KERNEL_OK")
</pallas_src>

<mosaic_0001>
module attributes {stable_mosaic.version = 11 : i64} {
  func.func @frksm_kernel(%arg0: i32, %arg1: i32, %arg2: memref<1x4x256xbf16, #tpu.memory_space<vmem>>, %arg3: memref<8x4xbf16, #tpu.memory_space<vmem>>, %arg4: memref<1x8x1xf32, #tpu.memory_space<vmem>>, %arg5: memref<1x8x256xbf16, #tpu.memory_space<vmem>>) attributes {dimension_semantics = [#tpu.dimension_semantics<parallel>, #tpu.dimension_semantics<parallel>], iteration_bounds = array<i64: 2, 1>, scalar_prefetch = 0 : i64, scratch_operands = 0 : i64, tpu.core_type = #tpu.core_type<tc>, window_params = [{transform_indices = @transform_0, window_bounds = array<i64: 1, 4, 256>}, {pipeline_mode = #tpu.pipeline_mode<synchronous>, transform_indices = @transform_1, window_bounds = array<i64: 8, 4>}, {transform_indices = @transform_2, window_bounds = array<i64: 1, 8, 1>}, {transform_indices = @transform_3, window_bounds = array<i64: 1, 8, 256>}]} {
    %c0 = arith.constant 0 : index
    %c0_0 = arith.constant 0 : index
    %0 = vector.load %arg3[%c0, %c0_0] : memref<8x4xbf16, #tpu.memory_space<vmem>>, vector<8x4xbf16>
    %c0_1 = arith.constant 0 : index
    %c0_2 = arith.constant 0 : index
    %c0_3 = arith.constant 0 : index
    %1 = vector.load %arg2[%c0_1, %c0_2, %c0_3] : memref<1x4x256xbf16, #tpu.memory_space<vmem>>, vector<1x4x256xbf16>
    %2 = vector.shape_cast %1 : vector<1x4x256xbf16> to vector<4x256xbf16>
    %cst = arith.constant dense<0.000000e+00> : vector<8x256xf32>
    %3 = tpu.matmul %0, %2, %cst {dimension_numbers = #tpu.dot_dimension_numbers<[1], [0], [0], [1], [0, 0, 1, 1], [], []>} : vector<8x4xbf16>, vector<4x256xbf16>, vector<8x256xf32> -> vector<8x256xf32>
    %c0_4 = arith.constant 0 : index
    %c0_5 = arith.constant 0 : index
    %c0_6 = arith.constant 0 : index
    %4 = vector.load %arg4[%c0_4, %c0_5, %c0_6] : memref<1x8x1xf32, #tpu.memory_space<vmem>>, vector<1x8x1xf32>
    %5 = vector.shape_cast %4 : vector<1x8x1xf32> to vector<8x1xf32>
    %6 = vector.broadcast %5 : vector<8x1xf32> to vector<8x256xf32>
    %7 = arith.addf %3, %6 : vector<8x256xf32>
    %8 = arith.truncf %7 : vector<8x256xf32> to vector<8x256xbf16>
    %9 = arith.negf %8 : vector<8x256xbf16>
    %10 = math.exp %9 : vector<8x256xbf16>
    %cst_7 = arith.constant 1.000000e+00 : bf16
    %11 = vector.broadcast %cst_7 : bf16 to vector<8x256xbf16>
    %12 = arith.addf %11, %10 : vector<8x256xbf16>
    %13 = arith.divf %11, %12 : vector<8x256xbf16>
    %c0_8 = arith.constant 0 : index
    %c0_9 = arith.constant 0 : index
    %c0_10 = arith.constant 0 : index
    %14 = vector.load %arg5[%c0_8, %c0_9, %c0_10] : memref<1x8x256xbf16, #tpu.memory_space<vmem>>, vector<1x8x256xbf16>
    %15 = vector.shape_cast %14 : vector<1x8x256xbf16> to vector<8x256xbf16>
    %16 = vector.shape_cast %13 : vector<8x256xbf16> to vector<1x8x256xbf16>
    tpu.vector_store %arg5[%c0_8, %c0_9, %c0_10], %16 {strides = array<i32>} : memref<1x8x256xbf16, #tpu.memory_space<vmem>>, vector<1x8x256xbf16>,
    return
  }
  func.func @transform_0(%arg0: i32, %arg1: i32) -> (i32, i32, i32) {
    %c0_i32 = arith.constant 0 : i32
    %c0_i32_0 = arith.constant 0 : i32
    return %arg0, %c0_i32, %arg1 : i32, i32, i32
  }
  func.func @transform_1(%arg0: i32, %arg1: i32) -> (i32, i32) {
    %c0_i32 = arith.constant 0 : i32
    %c0_i32_0 = arith.constant 0 : i32
    %c0_i32_1 = arith.constant 0 : i32
    return %c0_i32, %c0_i32_0 : i32, i32
  }
  func.func @transform_2(%arg0: i32, %arg1: i32) -> (i32, i32, i32) {
    %c0_i32 = arith.constant 0 : i32
    %c0_i32_0 = arith.constant 0 : i32
    %c0_i32_1 = arith.constant 0 : i32
    return %arg0, %c0_i32, %c0_i32_0 : i32, i32, i32
  }
  func.func @transform_3(%arg0: i32, %arg1: i32) -> (i32, i32, i32) {
    %c0_i32 = arith.constant 0 : i32
    %c0_i32_0 = arith.constant 0 : i32
    return %arg0, %c0_i32, %arg1 : i32, i32, i32
  }
}

</mosaic_0001>

<llo_original>
// kernel: tpu_custom_call.1
$region0: #{tpu_custom_call.1}
  #allocation0 [shape = 'u32[]', space=smem, size = 0x4, offset = 0x4, fixed_abs, tag = 'smem constant byte address 0x4 - core index']
  #allocation1 [shape = 'u32[72,128]{1,0:T(1,128)}', space=vmem, size = 0x9000, scoped, tag = 'internal scratch']
  %s0 = inlined_call_operand.vmem [shape: bf16[2,4,256], index: 0, kind: input, shape index: {}]
  %s1 = inlined_call_operand.vmem [shape: bf16[8,4], index: 1, kind: input, shape index: {}]
  %s2 = inlined_call_operand.vmem [shape: f32[2,8,1], index: 2, kind: input, shape index: {}]
  %s3 = inlined_call_operand.hbm [shape: bf16[2,8,256], index: 3, kind: output, shape index: {}]
  %s4 = sld [smem:[#allocation0]]
  $region45: #{tpu_custom_call.1} parent=0
    _
  %s6 = ssub.s32 1, %s4
  %s7 = scalar_select 0, %s6, %s4
  $region1: #{tpu_custom_call.1} parent=0
    #allocation2 [shape = 'u8[8192]{0}', space=vmem, size = 0x2000, scoped, tag = 'output window, operand 0']
    #allocation3 [shape = 's32[2]{0}', space=sflag, size = 0x8, scoped, tag = 'scoped memory for tpu_custom_call.1']
    %8 = vsyncpa [#allocation3], 0
    %s9 = scalar_lea.sflag [#allocation3], 1
    %10 = vsyncpa %s9, 0
    loop: start=0, step=1, limit=4
    $region2: #{tpu_custom_call.1} parent=1 // loop_pre_header
      _
    $region3: #{tpu_custom_call.1} parent=1 // loop_header
      %s12 = sphi 0, %s16
      %p13 = scmp.ge.s32.totalorder %s12, 4
      %s19 = sphi 0, %s31
      %s20 = sphi 0, %s27
      %s21 = sphi 0, %s19
      %s22 = sphi 0, %s20
      %s23 = sphi 0, %s21
      %s24 = sphi 0, %s22
      %s36 = sphi 0, %s38
      %s39 = sphi 0, %s36
      %s40 = sphi 0, %s39
      %s56 = sphi 0, %s40
      %s60 = sphi 0, %s60
      %s62 = sphi 0, %s60
      %s63 = sphi 0, %s62
      %s77 = sphi 0, %s63
      %s83 = sphi 0, %s85
      %s86 = sphi 0, %s83
      %s87 = sphi 0, %s86
      %s103 = sphi 0, %s87
      %s111 = sphi 0, %s113
      %s114 = sphi 0, %s111
      %s115 = sphi 0, %s114
      %s131 = sphi 0, %s115
    $region4: #{tpu_custom_call.1} parent=1 // loop_header_branch
      %15 = sbr.rel (%p13) target = $region8
    $region5: #{tpu_custom_call.1} parent=1 // loop_body
      %s17 = ssub.s32 %s12, 1
      %s18 = ssub.s32 %s12, 2
      %s25 = sadd.s32 1, %s20
      %p26 = scmp.ge.s32.totalorder %s25, 1
      %s27 = scalar_select %p26, 0, %s25
      %s28 = sadd.s32 1, %s19
      %s29 = scalar_select %p26, %s28, %s19
      %p30 = scmp.ge.s32.totalorder %s29, 2
      %s31 = scalar_select %p30, 0, %s29
      %s32 = ssub.s32 %s19, %s31
      %s33 = ssub.s32 %s20, %s27
      %s34 = sor.u32 %s32, %s33
      %p35 = scmp.eq.s32.totalorder %s34, 0
      %s37 = sadd.s32 %s36, 1
      %s38 = scalar_select %p35, %s36, %s37
      %p41 = pneg %p35
      %p42 = scmp.eq.s32.totalorder %s12, 1
      %p43 = por %p41, %p42
      %p44 = scmp.ne.s32.totalorder %s36, %s39
      %p45 = scmp.eq.s32.totalorder %s12, 0
      %p46 = por %p44, %p45
      %p47 = scmp.ne.s32.totalorder %s36, %s39
      %p48 = scmp.eq.s32.totalorder %s17, 1
      %p49 = por %p47, %p48
      %p50 = scmp.ne.s32.totalorder %s39, %s40
      %p51 = scmp.eq.s32.totalorder %s17, 0
      %p52 = por %p50, %p51
      %p53 = scmp.ne.s32.totalorder %s39, %s40
      %p54 = scmp.eq.s32.totalorder %s18, 1
      %p55 = por %p53, %p54
      %p57 = scmp.ne.s32.totalorder %s40, %s56
      %p58 = scmp.eq.s32.totalorder %s18, 0
      %p59 = por %p57, %p58
      %s61 = sadd.s32 %s60, 1
      %p64 = scmp.eq.s32.totalorder %s12, 1
      %p65 = scmp.ne.s32.totalorder %s60, %s62
      %p66 = scmp.eq.s32.totalorder %s12, 0
      %p67 = por %p65, %p66
      %p68 = scmp.ne.s32.totalorder %s60, %s62
      %p69 = scmp.eq.s32.totalorder %s17, 1
      %p70 = por %p68, %p69
      %p71 = scmp.ne.s32.totalorder %s62, %s63
      %p72 = scmp.eq.s32.totalorder %s17, 0
      %p73 = por %p71, %p72
      %p74 = scmp.ne.s32.totalorder %s62, %s63
      %p75 = scmp.eq.s32.totalorder %s18, 1
      %p76 = por %p74, %p75
      %p78 = scmp.ne.s32.totalorder %s63, %s77
      %p79 = scmp.eq.s32.totalorder %s18, 0
      %p80 = por %p78, %p79
      %s81 = ssub.s32 %s19, %s31
      %p82 = scmp.eq.s32.totalorder %s81, 0
      %s84 = sadd.s32 %s83, 1
      %s85 = scalar_select %p82, %s83, %s84
      %p88 = pneg %p82
      %p89 = scmp.eq.s32.totalorder %s12, 1
      %p90 = por %p88, %p89
      %p91 = scmp.ne.s32.totalorder %s83, %s86
      %p92 = scmp.eq.s32.totalorder %s12, 0
      %p93 = por %p91, %p92
      %p94 = scmp.ne.s32.totalorder %s83, %s86
      %p95 = scmp.eq.s32.totalorder %s17, 1
      %p96 = por %p94, %p95
      %p97 = scmp.ne.s32.totalorder %s86, %s87
      %p98 = scmp.eq.s32.totalorder %s17, 0
      %p99 = por %p97, %p98
      %p100 = scmp.ne.s32.totalorder %s86, %s87
      %p101 = scmp.eq.s32.totalorder %s18, 1
      %p102 = por %p100, %p101
      %p104 = scmp.ne.s32.totalorder %s87, %s103
      %p105 = scmp.eq.s32.totalorder %s18, 0
      %p106 = por %p104, %p105
      %s107 = ssub.s32 %s19, %s31
      %s108 = ssub.s32 %s20, %s27
      %s109 = sor.u32 %s107, %s108
      %p110 = scmp.eq.s32.totalorder %s109, 0
      %s112 = sadd.s32 %s111, 1
      %s113 = scalar_select %p110, %s111, %s112
      %p116 = pneg %p110
      %p117 = scmp.eq.s32.totalorder %s12, 1
      %p118 = por %p116, %p117
      %p119 = scmp.ne.s32.totalorder %s111, %s114
      %p120 = scmp.eq.s32.totalorder %s12, 0
      %p121 = por %p119, %p120
      %p122 = scmp.ne.s32.totalorder %s111, %s114
      %p123 = scmp.eq.s32.totalorder %s17, 1
      %p124 = por %p122, %p123
      %p125 = scmp.ne.s32.totalorder %s114, %s115
      %p126 = scmp.eq.s32.totalorder %s17, 0
      %p127 = por %p125, %p126
      %p128 = scmp.ne.s32.totalorder %s114, %s115
      %p129 = scmp.eq.s32.totalorder %s18, 1
      %p130 = por %p128, %p129
      %p132 = scmp.ne.s32.totalorder %s115, %s131
      %p133 = scmp.eq.s32.totalorder %s18, 0
      %p134 = por %p132, %p133
      %p135 = scmp.le.s32.totalorder 1, %s12
      %p136 = scmp.lt.s32.totalorder %s12, 3
      %p137 = pnand %p135, %p136
      %p138 = pneg %p137
      // Predicated region
      $region9: #{tpu_custom_call.1} parent=5 // pred_check
        _
      $region10: #{tpu_custom_call.1} parent=5 // pred_check_branch
        %140 = sbr.rel (%p137) target = $region12
      $region11: #{tpu_custom_call.1} parent=5 // pred_region
        %s141 = ssub.s32 %s12, 1
        // Predicated region
        $region13: #{tpu_custom_call.1} parent=11 // pred_check
          %p142 = pneg %p73
        $region14: #{tpu_custom_call.1} parent=11 // pred_check_branch
          %144 = sbr.rel (%p142) target = $region16
        $region15: #{tpu_custom_call.1} parent=11 // pred_region
          _
        $region16: #{tpu_custom_call.1} parent=11 // pred_fallthru
          _
      $region12: #{tpu_custom_call.1} parent=5 // pred_fallthru
        _
      %p145 = scmp.lt.s32.totalorder %s12, 2
      // Predicated region
      $region17: #{tpu_custom_call.1} parent=5 // pred_check
        %p146 = pneg %p145
      $region18: #{tpu_custom_call.1} parent=5 // pred_check_branch
        %148 = sbr.rel (%p146) target = $region20
      $region19: #{tpu_custom_call.1} parent=5 // pred_region
        // Predicated region
        $region21: #{tpu_custom_call.1} parent=19 // pred_check
          %p149 = pneg %p46
        $region22: #{tpu_custom_call.1} parent=19 // pred_check_branch
          %151 = sbr.rel (%p149) target = $region24
        $region23: #{tpu_custom_call.1} parent=19 // pred_region
          %s152 = smul.u32 2, %s20
          %p153 = scmp.lt.s32.totalorder %s19, 1
          %s154 = scalar_select %p153, %s19, 1
          %p155 = scmp.lt.s32.totalorder %s152, 1
          %s156 = scalar_select %p155, %s152, 1
          %s157 = smul.addr %s154, 2
          %s158 = sadd.s32 %s156, %s157
          %s159 = smul.addr %s158, 2
          %s160 = scalar_lea.vmem %s0, %s159
          %s161 = smul.u32 2, %s20
        $region24: #{tpu_custom_call.1} parent=19 // pred_fallthru
          _
        // Predicated region
        $region25: #{tpu_custom_call.1} parent=19 // pred_check
          %p162 = pneg %p93
        $region26: #{tpu_custom_call.1} parent=19 // pred_check_branch
          %164 = sbr.rel (%p162) target = $region28
        $region27: #{tpu_custom_call.1} parent=19 // pred_region
          %p165 = scmp.lt.s32.totalorder %s19, 1
          %s166 = scalar_select %p165, %s19, 1
          %s167 = smul.addr %s166, 8
          %s168 = scalar_lea.vmem %s2, %s167
        $region28: #{tpu_custom_call.1} parent=19 // pred_fallthru
          _
      $region20: #{tpu_custom_call.1} parent=5 // pred_fallthru
        _
      %p169 = scmp.le.s32.totalorder 1, %s12
      %p170 = scmp.lt.s32.totalorder %s12, 3
      %p171 = pnand %p169, %p170
      %p172 = pneg %p171
      // Predicated region
      $region29: #{tpu_custom_call.1} parent=5 // pred_check
        _
      $region30: #{tpu_custom_call.1} parent=5 // pred_check_branch
        %174 = sbr.rel (%p171) target = $region32
      $region31: #{tpu_custom_call.1} parent=5 // pred_region
        %s175 = ssub.s32 %s12, 1
        %s176 = smul.u32 2, %s22
        %p177 = scmp.lt.s32.totalorder %s21, 1
        %s178 = scalar_select %p177, %s21, 1
        %p179 = scmp.lt.s32.totalorder %s176, 1
        %s180 = scalar_select %p179, %s176, 1
        %s181 = smul.addr %s178, 2
        %s182 = sadd.s32 %s180, %s181
        %s183 = smul.addr %s182, 2
        %s184 = scalar_lea.vmem %s0, %s183
        %p185 = pneg %p52
        %p186 = pneg %p49
        %p187 = pneg %p73
        %p188 = pneg %p70
        %p189 = scmp.lt.s32.totalorder %s21, 1
        %s190 = scalar_select %p189, %s21, 1
        %s191 = smul.addr %s190, 8
        %s192 = scalar_lea.vmem %s2, %s191
        %p193 = pneg %p99
        %p194 = pneg %p96
        %p195 = pneg %p127
        %p196 = pneg %p124
        %s197 = sand.u32 %s114, 1
        %s198 = scalar_lea.sflag [#allocation3], %s197
        %s199 = sand.u32 %s114, 1
        %s200 = smul.addr %s199, 8
        %s201 = scalar_lea.vmem [#allocation2], %s200
        %s202 = smul.u32 2, %s22
        %p203 = scmp.lt.s32.totalorder %s21, 1
        %s204 = scalar_select %p203, %s21, 1
        %p205 = scmp.lt.s32.totalorder %s202, 1
        %s206 = scalar_select %p205, %s202, 1
        %s207 = smul.addr %s204, 2
        %s208 = sadd.s32 %s206, %s207
        %s209 = smul.addr %s208, 2
        %s210 = scalar_lea.vmem %s0, %s209
        %s211 = smul.u32 2, %s22
        %p212 = scmp.lt.s32.totalorder %s21, 1
        %s213 = scalar_select %p212, %s21, 1
        %s214 = smul.addr %s213, 8
        %s215 = scalar_lea.vmem %s2, %s214
        %s216 = smul.u32 2, %s22
        %v219 = vld [vmem:[%s1] sm:$0xf]
        %v220 = vld [vmem:[%s210] sm:$0xf]
        %v221 = vld [vmem:[%s215] sm:$0xff]
        %223 = vset.pattern.permute.xlu0 0
        %224 = vperm.xlu0 %223, %v221
        %v225 = vpop.permute.xlu0 %224
        %228 = vst [vmem:[#allocation1] ss:$4 sm:$0xff] %v220
        %v229 = vld.sshfl [vmem:[#allocation1] sm:$0xff pattern:$0x73625140]
        %v230 = vld.sshfl [vmem:[#allocation1 + $0x8] sm:$0xff pattern:$0x73625140]
        %vm231 = vcmask 31744
        %v233 = vsel %vm231, %v219, 0
        %vm235 = vcmask 1041408
        %v236 = vsel %vm235, %v229, 0
        %v238 = vsel %vm235, %v230, 0
        %240 = vmatpush.bf16.msra.mxu0 0
        %241 = vmatpush.bf16.msra.mxu0 0
        %242 = vmatpush.bf16.msra.mxu0 0
        %243 = vmatpush.bf16.msra.mxu0 0
        %244 = vmatpush.bf16.msra.mxu0 0
        %245 = vmatpush.bf16.msra.mxu0 0
        %246 = vmatpush.bf16.msra.mxu0 0
        %247 = vmatpush.bf16.msra.mxu0 %v236
        %248 = vmatmul.bf16.gmra.mxu0 %v233
        %v249 = vpop.f32.mrf.mxu0
        %v250 = vadd.f32 %v225, %v249
        %v251 = vpop.f32.mrf.mxu0
        %252 = vdwg.mxu0
        %253 = vmatpush.bf16.msra.mxu0 0
        %254 = vmatpush.bf16.msra.mxu0 0
        %255 = vmatpush.bf16.msra.mxu0 0
        %256 = vmatpush.bf16.msra.mxu0 0
        %257 = vmatpush.bf16.msra.mxu0 0
        %258 = vmatpush.bf16.msra.mxu0 0
        %259 = vmatpush.bf16.msra.mxu0 0
        %260 = vmatpush.bf16.msra.mxu0 %v238
        %261 = vmatmul.bf16.gmra.mxu0 %v233
        %v262 = vpop.f32.mrf.mxu0
        %v263 = vadd.f32 %v225, %v262
        %v264 = vpop.f32.mrf.mxu0
        %265 = vdwg.mxu0
        %v266 = vpack.c.bf16 %v263, %v250
        %v267 = vxor.u32 %v266, 2147516416
        %v268 = vunpack.c.l.bf16 %v267
        %v269 = vunpack.c.h.bf16 %v267
        %v270 = vmul.f32 %v268, 1.442695
        %v271 = vpow.pop %v270
        %v272 = vmul.f32 %v269, 1.442695
        %v273 = vpow.pop %v272
        %v274 = vpack.c.bf16 %v273, %v271
        %v275 = vunpack.c.l.bf16 %v274
        %v276 = vunpack.c.h.bf16 %v274
        %v277 = vadd.f32 %v275, 1.0
        %v278 = vadd.f32 %v276, 1.0
        %v279 = vpack.c.bf16 %v278, %v277
        %v280 = vunpack.c.h.bf16 1065369472
        %v281 = vunpack.c.l.bf16 1065369472
        %v282 = vunpack.c.h.bf16 %v279
        %v283 = vunpack.c.l.bf16 %v279
        %v284 = vrcp.pop %v282
        %v285 = vmul.f32 %v280, %v284
        %v286 = vrcp.pop %v283
        %v287 = vmul.f32 %v281, %v286
        %v288 = vpack.c.bf16 %v285, %v287
        %289 = vst [vmem:[%s201] sm:$0xff] %v288
        %s290 = sand.u32 %s114, 1
        %s291 = scalar_lea.sflag [#allocation3], %s290
        %s292 = sand.u32 %s114, 1
        %s293 = smul.addr %s292, 8
        %s294 = scalar_lea.vmem [#allocation2], %s293
        // Predicated region
        $region33: #{tpu_custom_call.1} parent=31 // pred_check
          %p295 = pneg %p124
        $region34: #{tpu_custom_call.1} parent=31 // pred_check_branch
          %297 = sbr.rel (%p295) target = $region36
        $region35: #{tpu_custom_call.1} parent=31 // pred_region
          %s298 = smul.u32 2, %s22
          %300 = vsyncadd %s291, 0
          %s301 = smul.addr %s21, 2
          %s302 = sadd.s32 %s298, %s301
          %s303 = smul.addr %s302, 4
          %s304 = scalar_lea.hbm %s3, %s303
          %s306 = sshll.u32 %s294, 4
          %s307 = int_to_ptr.vmem [resolvable:$true] %s306
          %s308 = sshll.u32 %s304, 4
          %s309 = int_to_ptr.hbm [resolvable:$true] %s308
          %311 = dma.vmem_to_hbm [thread:$0]  %s307, 128, %s309, %s291
        $region36: #{tpu_custom_call.1} parent=31 // pred_fallthru
          _
      $region32: #{tpu_custom_call.1} parent=5 // pred_fallthru
        _
      %p312 = scmp.le.s32.totalorder 2, %s12
      // Predicated region
      $region37: #{tpu_custom_call.1} parent=5 // pred_check
        %p313 = pneg %p312
      $region38: #{tpu_custom_call.1} parent=5 // pred_check_branch
        %315 = sbr.rel (%p313) target = $region40
      $region39: #{tpu_custom_call.1} parent=5 // pred_region
        %s316 = ssub.s32 %s12, 2
        // Predicated region
        $region41: #{tpu_custom_call.1} parent=39 // pred_check
          %p317 = pneg %p130
        $region42: #{tpu_custom_call.1} parent=39 // pred_check_branch
          %319 = sbr.rel (%p317) target = $region44
        $region43: #{tpu_custom_call.1} parent=39 // pred_region
          %s320 = sand.u32 %s115, 1
          %s321 = scalar_lea.sflag [#allocation3], %s320
          %s322 = sand.u32 %s115, 1
          %s323 = smul.addr %s322, 8
          %s324 = scalar_lea.vmem [#allocation2], %s323
          %326 = dma.done %s321, 128
        $region44: #{tpu_custom_call.1} parent=39 // pred_fallthru
          _
      $region40: #{tpu_custom_call.1} parent=5 // pred_fallthru
        _
    $region6: #{tpu_custom_call.1} parent=1 // loop_footer
      %s16 = sadd.s32 1, %s12
    $region7: #{tpu_custom_call.1} parent=1 // loop_footer_branch
      %11 = sbr.rel target = $region3
    $region8: #{tpu_custom_call.1} parent=1 // loop_exit
      _
    %327 = vsyncpa [#allocation3], 1
    %s328 = scalar_lea.sflag [#allocation3], 1
    %329 = vsyncpa %s328, 1

</llo_original>
